<compile_context>
chip_gen: v5e
topology: v5e:2x2
jax: 0.10.0
libtpu: 0.0.40
codegen_flags: <defaults>
</compile_context>

<pallas_src>
import functools
import math

import jax
import jax.numpy as jnp
from jax.experimental import pallas as pl
from jax.experimental.pallas import tpu as pltpu


def _round_up(x, m):
    return (x + m - 1) // m * m


def _decoder_kernel(n_layers, batch, hp, xp,
                    tok_ref, emb_ref, h_ref, c_ref, w_ref, b_ref,
                    wout_ref, bout_ref,
                    pred_ref, hout_ref, cout_ref):
    """One decoder step: embed -> n_layers fused LSTM cells -> vocab projection.

    Kernel-facing (padded, lane-dense) layout:
      tok_ref : (B,)              int32  SMEM
      emb_ref : (V, XP)           f32    VMEM   embedding table (cols >= E are 0)
      h_ref   : (L, B, HP)        f32    VMEM   previous hidden (cols >= H are 0)
      c_ref   : (L, B, HP)        f32    VMEM   previous cell
      w_ref   : (L, XP+HP, 4*HP)  f32    VMEM   fused [W_ih; W_hh], gate order (i,f,o,g)
      b_ref   : (L, 1, 4*HP)      f32    VMEM   b_ih + b_hh
      wout_ref: (HP, OP)          f32    VMEM
      bout_ref: (1, OP)           f32    VMEM
    """
    # In-kernel embedding gather: one dynamic-row slice per batch element.
    x = jnp.concatenate(
        [emb_ref[pl.ds(tok_ref[b], 1), :] for b in range(batch)], axis=0)   # (B, XP)

    h_top = None
    for l in range(n_layers):
        h_prev = h_ref[l]                                                    # (B, HP)
        c_prev = c_ref[l]                                                    # (B, HP)

        xh = jnp.concatenate([x, h_prev], axis=1)                            # (B, XP+HP)
        gates = (jnp.dot(xh, w_ref[l], preferred_element_type=jnp.float32)
                 + b_ref[l])                                                 # (B, 4*HP)

        # Gate order (i, f, o, g): sigmoid on one contiguous 3*HP-wide slice,
        # tanh on the last HP lanes; all boundaries are 128-lane multiples.
        sig = jax.nn.sigmoid(gates[:, :3 * hp])
        i_g = sig[:, 0 * hp:1 * hp]
        f_g = sig[:, 1 * hp:2 * hp]
        o_g = sig[:, 2 * hp:3 * hp]
        g_g = jnp.tanh(gates[:, 3 * hp:])

        c_new = f_g * c_prev + i_g * g_g
        h_new = o_g * jnp.tanh(c_new)

        hout_ref[l] = h_new
        cout_ref[l] = c_new

        h_top = h_new
        # Next layer input (inter-layer dropout = identity in eval mode).
        if xp == hp:
            x = h_new
        else:
            x = jnp.concatenate(
                [h_new, jnp.zeros((batch, xp - hp), jnp.float32)], axis=1)

    pred_ref[...] = (jnp.dot(h_top, wout_ref[...], preferred_element_type=jnp.float32)
                     + bout_ref[...])


def init_params(key, output_dim, emb_dim, hid_dim, n_layers):
    """PyTorch-layout parameters (gate order i,f,g,o), weights pre-transposed to (in, 4H)."""
    ks = jax.random.split(key, 4 + 4 * n_layers)
    k = 1.0 / math.sqrt(hid_dim)

    embedding = jax.random.normal(ks[0], (output_dim, emb_dim), jnp.float32)

    w_ih_t, w_hh_t, b_ih, b_hh = [], [], [], []
    for l in range(n_layers):
        in_dim = emb_dim if l == 0 else hid_dim
        kk = jax.random.split(ks[1 + l], 4)
        w_ih_t.append(jax.random.uniform(kk[0], (in_dim, 4 * hid_dim), jnp.float32, -k, k))
        w_hh_t.append(jax.random.uniform(kk[1], (hid_dim, 4 * hid_dim), jnp.float32, -k, k))
        b_ih.append(jax.random.uniform(kk[2], (1, 4 * hid_dim), jnp.float32, -k, k))
        b_hh.append(jax.random.uniform(kk[3], (1, 4 * hid_dim), jnp.float32, -k, k))

    w_out_t = jax.random.uniform(ks[-2], (hid_dim, output_dim), jnp.float32, -k, k)
    b_out = jax.random.uniform(ks[-1], (1, output_dim), jnp.float32, -k, k)

    return {
        "embedding": embedding,
        "w_ih_t": w_ih_t, "w_hh_t": w_hh_t, "b_ih": b_ih, "b_hh": b_hh,
        "w_out_t": w_out_t, "b_out": b_out,
    }


def pack_decoder_params(params, output_dim, emb_dim, hid_dim, n_layers):
    """One-time host repack into the fused / padded / lane-dense kernel layout."""
    H = hid_dim
    HP = _round_up(H, 128)
    XP = _round_up(max(emb_dim, H), 128)
    OP = _round_up(output_dim, 128)
    perm = (0, 1, 3, 2)          # new gate slot -> old gate index:  (i,f,o,g) <- (i,f,g,o)

    w_fused = jnp.zeros((n_layers, XP + HP, 4 * HP), jnp.float32)
    b_fused = jnp.zeros((n_layers, 1, 4 * HP), jnp.float32)
    for l in range(n_layers):
        in_dim = emb_dim if l == 0 else H
        w_ih = params["w_ih_t"][l]                       # (in_dim, 4H)
        w_hh = params["w_hh_t"][l]                       # (H, 4H)
        bias = params["b_ih"][l] + params["b_hh"][l]     # (1, 4H)   pre-summed bias
        for slot, old in enumerate(perm):
            c0 = slot * HP
            w_fused = w_fused.at[l, :in_dim, c0:c0 + H].set(w_ih[:, old * H:(old + 1) * H])
            w_fused = w_fused.at[l, XP:XP + H, c0:c0 + H].set(w_hh[:, old * H:(old + 1) * H])
            b_fused = b_fused.at[l, :, c0:c0 + H].set(bias[:, old * H:(old + 1) * H])

    vocab = params["embedding"].shape[0]
    emb_p = jnp.zeros((vocab, XP), jnp.float32).at[:, :emb_dim].set(params["embedding"])
    w_out_p = jnp.zeros((HP, OP), jnp.float32).at[:H, :output_dim].set(params["w_out_t"])
    b_out_p = jnp.zeros((1, OP), jnp.float32).at[:, :output_dim].set(params["b_out"])

    return {
        "embedding": emb_p, "w_fused": w_fused, "b_fused": b_fused,
        "w_out": w_out_p, "b_out": b_out_p,
        "dims": {"H": H, "HP": HP, "XP": XP, "OP": OP,
                 "output_dim": output_dim, "n_layers": n_layers},
    }


def decoder_forward(tokens, hidden, cell, packed):
    """tokens: (B,) int32; hidden/cell: (L, B, H) f32. Returns (pred, hidden, cell)."""
    d = packed["dims"]
    L, B, H = hidden.shape
    HP, XP, OP = d["HP"], d["XP"], d["OP"]
    output_dim = d["output_dim"]

    # Pad state to the lane-dense kernel layout (padded lanes remain exactly 0
    # through the LSTM recurrence, so this is loss-free).
    h_p = jnp.zeros((L, B, HP), jnp.float32).at[:, :, :H].set(hidden)
    c_p = jnp.zeros((L, B, HP), jnp.float32).at[:, :, :H].set(cell)

    vmem = pl.BlockSpec(memory_space=pltpu.MemorySpace.VMEM)
    smem = pl.BlockSpec(memory_space=pltpu.MemorySpace.SMEM)

    kernel = functools.partial(_decoder_kernel, L, B, HP, XP)

    pred_p, h_out_p, c_out_p = pl.pallas_call(
        kernel,
        out_shape=(
            jax.ShapeDtypeStruct((B, OP), jnp.float32),
            jax.ShapeDtypeStruct((L, B, HP), jnp.float32),
            jax.ShapeDtypeStruct((L, B, HP), jnp.float32),
        ),
        in_specs=[smem, vmem, vmem, vmem, vmem, vmem, vmem, vmem],
        out_specs=(vmem, vmem, vmem),
        # In-place state update: hidden/cell inputs alias hidden/cell outputs.
        input_output_aliases={2: 1, 3: 2},
    )(tokens.astype(jnp.int32), packed["embedding"], h_p, c_p,
      packed["w_fused"], packed["b_fused"], packed["w_out"], packed["b_out"])

    return pred_p[:, :output_dim], h_out_p[:, :, :H], c_out_p[:, :, :H]


def _reference_forward(tokens, hidden, cell, params):
    """Pure-JAX reference of the PyTorch Decoder.forward (eval mode)."""
    n_layers, B, H = hidden.shape
    x = params["embedding"][tokens]
    h_out, c_out = [], []
    for l in range(n_layers):
        gates = (x @ params["w_ih_t"][l] + hidden[l] @ params["w_hh_t"][l]
                 + params["b_ih"][l] + params["b_hh"][l])
        i_g = jax.nn.sigmoid(gates[:, 0 * H:1 * H])
        f_g = jax.nn.sigmoid(gates[:, 1 * H:2 * H])
        g_g = jnp.tanh(gates[:, 2 * H:3 * H])
        o_g = jax.nn.sigmoid(gates[:, 3 * H:4 * H])
        c_new = f_g * cell[l] + i_g * g_g
        h_new = o_g * jnp.tanh(c_new)
        h_out.append(h_new)
        c_out.append(c_new)
        x = h_new
    pred = x @ params["w_out_t"] + params["b_out"]
    return pred, jnp.stack(h_out), jnp.stack(c_out)


if __name__ == "__main__":
    OUTPUT_DIM = 50     # vocab size
    EMB_DIM = 16
    HID_DIM = 32
    N_LAYERS = 2
    BATCH = 2
    T_STEPS = 4         # short greedy decode loop (Seq2Seq loop, teacher forcing off)

    key = jax.random.PRNGKey(0)
    k_par, k_tok, k_h, k_c = jax.random.split(key, 4)

    params = init_params(k_par, OUTPUT_DIM, EMB_DIM, HID_DIM, N_LAYERS)
    packed = pack_decoder_params(params, OUTPUT_DIM, EMB_DIM, HID_DIM, N_LAYERS)

    tokens = jax.random.randint(k_tok, (BATCH,), 0, OUTPUT_DIM, dtype=jnp.int32)
    hidden = jax.random.normal(k_h, (N_LAYERS, BATCH, HID_DIM), jnp.float32)
    cell = jax.random.normal(k_c, (N_LAYERS, BATCH, HID_DIM), jnp.float32)

    # --- single decoder step ---
    pred, h_new, c_new = decoder_forward(tokens, hidden, cell, packed)
    jax.block_until_ready((pred, h_new, c_new))

    pred_r, h_r, c_r = _reference_forward(tokens, hidden, cell, params)
    assert jnp.allclose(pred, pred_r, atol=1e-4), "prediction mismatch"
    assert jnp.allclose(h_new, h_r, atol=1e-4), "hidden mismatch"
    assert jnp.allclose(c_new, c_r, atol=1e-4), "cell mismatch"

    # --- short autoregressive loop (Seq2Seq.forward with teacher_forcing_ratio=0) ---
    tok = tokens
    h_k, c_k = hidden, cell
    h_r2, c_r2 = hidden, cell
    for _ in range(T_STEPS):
        out_k, h_k, c_k = decoder_forward(tok, h_k, c_k, packed)
        out_r, h_r2, c_r2 = _reference_forward(tok, h_r2, c_r2, params)
        assert jnp.allclose(out_k, out_r, atol=1e-4), "loop prediction mismatch"
        assert jnp.allclose(h_k, h_r2, atol=1e-4), "loop hidden mismatch"
        assert jnp.allclose(c_k, c_r2, atol=1e-4), "loop cell mismatch"
        tok = jnp.argmax(out_r, axis=1).astype(jnp.int32)   # greedy feedback token
    jax.block_until_ready((out_k, h_k, c_k))

    print("KERNEL_OK")
</pallas_src>

<mosaic_0001>
module attributes {stable_mosaic.version = 11 : i64} {
  func.func @_decoder_kernel(%arg0: memref<2xi32, #tpu.memory_space<smem>>, %arg1: memref<50x128xf32, #tpu.memory_space<vmem>>, %arg2: memref<2x2x128xf32, #tpu.memory_space<vmem>>, %arg3: memref<2x2x128xf32, #tpu.memory_space<vmem>>, %arg4: memref<2x256x512xf32, #tpu.memory_space<vmem>>, %arg5: memref<2x1x512xf32, #tpu.memory_space<vmem>>, %arg6: memref<128x128xf32, #tpu.memory_space<vmem>>, %arg7: memref<1x128xf32, #tpu.memory_space<vmem>>, %arg8: memref<2x128xf32, #tpu.memory_space<vmem>>, %arg9: memref<2x2x128xf32, #tpu.memory_space<vmem>>, %arg10: memref<2x2x128xf32, #tpu.memory_space<vmem>>) attributes {dimension_semantics = [], scalar_prefetch = 0 : i64, scratch_operands = 0 : i64, tpu.core_type = #tpu.core_type<tc>} {
    %c0 = arith.constant 0 : index
    %0 = memref.load %arg0[%c0] : memref<2xi32, #tpu.memory_space<smem>>
    %1 = arith.index_cast %0 : i32 to index
    %c0_0 = arith.constant 0 : index
    %2 = vector.load %arg1[%1, %c0_0] : memref<50x128xf32, #tpu.memory_space<vmem>>, vector<1x128xf32>
    %c1 = arith.constant 1 : index
    %3 = memref.load %arg0[%c1] : memref<2xi32, #tpu.memory_space<smem>>
    %4 = arith.index_cast %3 : i32 to index
    %c0_1 = arith.constant 0 : index
    %5 = vector.load %arg1[%4, %c0_1] : memref<50x128xf32, #tpu.memory_space<vmem>>, vector<1x128xf32>
    %6 = tpu.concatenate %2, %5 in 0 : vector<1x128xf32>, vector<1x128xf32> -> vector<2x128xf32>
    %c0_2 = arith.constant 0 : index
    %c0_3 = arith.constant 0 : index
    %c0_4 = arith.constant 0 : index
    %7 = vector.load %arg2[%c0_2, %c0_3, %c0_4] : memref<2x2x128xf32, #tpu.memory_space<vmem>>, vector<1x2x128xf32>
    %8 = vector.shape_cast %7 : vector<1x2x128xf32> to vector<2x128xf32>
    %c0_5 = arith.constant 0 : index
    %c0_6 = arith.constant 0 : index
    %c0_7 = arith.constant 0 : index
    %9 = vector.load %arg3[%c0_5, %c0_6, %c0_7] : memref<2x2x128xf32, #tpu.memory_space<vmem>>, vector<1x2x128xf32>
    %10 = vector.shape_cast %9 : vector<1x2x128xf32> to vector<2x128xf32>
    %11 = tpu.concatenate %6, %8 in 1 : vector<2x128xf32>, vector<2x128xf32> -> vector<2x256xf32>
    %c0_8 = arith.constant 0 : index
    %c0_9 = arith.constant 0 : index
    %c0_10 = arith.constant 0 : index
    %12 = vector.load %arg4[%c0_8, %c0_9, %c0_10] : memref<2x256x512xf32, #tpu.memory_space<vmem>>, vector<1x256x512xf32>
    %13 = vector.shape_cast %12 : vector<1x256x512xf32> to vector<256x512xf32>
    %cst = arith.constant dense<0.000000e+00> : vector<2x512xf32>
    %14 = tpu.matmul %11, %13, %cst {dimension_numbers = #tpu.dot_dimension_numbers<[1], [0], [0], [1], [0, 0, 1, 1], [], []>} : vector<2x256xf32>, vector<256x512xf32>, vector<2x512xf32> -> vector<2x512xf32>
    %c0_11 = arith.constant 0 : index
    %c0_12 = arith.constant 0 : index
    %c0_13 = arith.constant 0 : index
    %15 = vector.load %arg5[%c0_11, %c0_12, %c0_13] : memref<2x1x512xf32, #tpu.memory_space<vmem>>, vector<1x1x512xf32>
    %16 = vector.shape_cast %15 : vector<1x1x512xf32> to vector<1x512xf32>
    %17 = vector.broadcast %16 : vector<1x512xf32> to vector<2x512xf32>
    %18 = arith.addf %14, %17 : vector<2x512xf32>
    %19 = vector.extract_strided_slice %18 {offsets = [0, 0], sizes = [2, 384], strides = [1, 1]} : vector<2x512xf32> to vector<2x384xf32>
    %20 = arith.negf %19 : vector<2x384xf32>
    %21 = math.exp %20 : vector<2x384xf32>
    %cst_14 = arith.constant 1.000000e+00 : f32
    %22 = vector.broadcast %cst_14 : f32 to vector<2x384xf32>
    %23 = arith.addf %22, %21 : vector<2x384xf32>
    %24 = arith.divf %22, %23 : vector<2x384xf32>
    %25 = vector.extract_strided_slice %24 {offsets = [0, 0], sizes = [2, 128], strides = [1, 1]} : vector<2x384xf32> to vector<2x128xf32>
    %26 = vector.extract_strided_slice %24 {offsets = [0, 128], sizes = [2, 128], strides = [1, 1]} : vector<2x384xf32> to vector<2x128xf32>
    %27 = vector.extract_strided_slice %24 {offsets = [0, 256], sizes = [2, 128], strides = [1, 1]} : vector<2x384xf32> to vector<2x128xf32>
    %28 = vector.extract_strided_slice %18 {offsets = [0, 384], sizes = [2, 128], strides = [1, 1]} : vector<2x512xf32> to vector<2x128xf32>
    %29 = math.tanh %28 : vector<2x128xf32>
    %30 = arith.mulf %26, %10 : vector<2x128xf32>
    %31 = arith.mulf %25, %29 : vector<2x128xf32>
    %32 = arith.addf %30, %31 : vector<2x128xf32>
    %33 = math.tanh %32 : vector<2x128xf32>
    %34 = arith.mulf %27, %33 : vector<2x128xf32>
    %c0_15 = arith.constant 0 : index
    %c0_16 = arith.constant 0 : index
    %c0_17 = arith.constant 0 : index
    %35 = vector.load %arg9[%c0_15, %c0_16, %c0_17] : memref<2x2x128xf32, #tpu.memory_space<vmem>>, vector<1x2x128xf32>
    %36 = vector.shape_cast %35 : vector<1x2x128xf32> to vector<2x128xf32>
    %37 = vector.shape_cast %34 : vector<2x128xf32> to vector<1x2x128xf32>
    tpu.vector_store %arg9[%c0_15, %c0_16, %c0_17], %37 {strides = array<i32>} : memref<2x2x128xf32, #tpu.memory_space<vmem>>, vector<1x2x128xf32>,
    %c0_18 = arith.constant 0 : index
    %c0_19 = arith.constant 0 : index
    %c0_20 = arith.constant 0 : index
    %38 = vector.load %arg10[%c0_18, %c0_19, %c0_20] : memref<2x2x128xf32, #tpu.memory_space<vmem>>, vector<1x2x128xf32>
    %39 = vector.shape_cast %38 : vector<1x2x128xf32> to vector<2x128xf32>
    %40 = vector.shape_cast %32 : vector<2x128xf32> to vector<1x2x128xf32>
    tpu.vector_store %arg10[%c0_18, %c0_19, %c0_20], %40 {strides = array<i32>} : memref<2x2x128xf32, #tpu.memory_space<vmem>>, vector<1x2x128xf32>,
    %c1_21 = arith.constant 1 : index
    %c0_22 = arith.constant 0 : index
    %c0_23 = arith.constant 0 : index
    %41 = vector.load %arg2[%c1_21, %c0_22, %c0_23] : memref<2x2x128xf32, #tpu.memory_space<vmem>>, vector<1x2x128xf32>
    %42 = vector.shape_cast %41 : vector<1x2x128xf32> to vector<2x128xf32>
    %c1_24 = arith.constant 1 : index
    %c0_25 = arith.constant 0 : index
    %c0_26 = arith.constant 0 : index
    %43 = vector.load %arg3[%c1_24, %c0_25, %c0_26] : memref<2x2x128xf32, #tpu.memory_space<vmem>>, vector<1x2x128xf32>
    %44 = vector.shape_cast %43 : vector<1x2x128xf32> to vector<2x128xf32>
    %45 = tpu.concatenate %34, %42 in 1 : vector<2x128xf32>, vector<2x128xf32> -> vector<2x256xf32>
    %c1_27 = arith.constant 1 : index
    %c0_28 = arith.constant 0 : index
    %c0_29 = arith.constant 0 : index
    %46 = vector.load %arg4[%c1_27, %c0_28, %c0_29] : memref<2x256x512xf32, #tpu.memory_space<vmem>>, vector<1x256x512xf32>
    %47 = vector.shape_cast %46 : vector<1x256x512xf32> to vector<256x512xf32>
    %cst_30 = arith.constant dense<0.000000e+00> : vector<2x512xf32>
    %48 = tpu.matmul %45, %47, %cst_30 {dimension_numbers = #tpu.dot_dimension_numbers<[1], [0], [0], [1], [0, 0, 1, 1], [], []>} : vector<2x256xf32>, vector<256x512xf32>, vector<2x512xf32> -> vector<2x512xf32>
    %c1_31 = arith.constant 1 : index
    %c0_32 = arith.constant 0 : index
    %c0_33 = arith.constant 0 : index
    %49 = vector.load %arg5[%c1_31, %c0_32, %c0_33] : memref<2x1x512xf32, #tpu.memory_space<vmem>>, vector<1x1x512xf32>
    %50 = vector.shape_cast %49 : vector<1x1x512xf32> to vector<1x512xf32>
    %51 = vector.broadcast %50 : vector<1x512xf32> to vector<2x512xf32>
    %52 = arith.addf %48, %51 : vector<2x512xf32>
    %53 = vector.extract_strided_slice %52 {offsets = [0, 0], sizes = [2, 384], strides = [1, 1]} : vector<2x512xf32> to vector<2x384xf32>
    %54 = arith.negf %53 : vector<2x384xf32>
    %55 = math.exp %54 : vector<2x384xf32>
    %cst_34 = arith.constant 1.000000e+00 : f32
    %56 = vector.broadcast %cst_34 : f32 to vector<2x384xf32>
    %57 = arith.addf %56, %55 : vector<2x384xf32>
    %58 = arith.divf %56, %57 : vector<2x384xf32>
    %59 = vector.extract_strided_slice %58 {offsets = [0, 0], sizes = [2, 128], strides = [1, 1]} : vector<2x384xf32> to vector<2x128xf32>
    %60 = vector.extract_strided_slice %58 {offsets = [0, 128], sizes = [2, 128], strides = [1, 1]} : vector<2x384xf32> to vector<2x128xf32>
    %61 = vector.extract_strided_slice %58 {offsets = [0, 256], sizes = [2, 128], strides = [1, 1]} : vector<2x384xf32> to vector<2x128xf32>
    %62 = vector.extract_strided_slice %52 {offsets = [0, 384], sizes = [2, 128], strides = [1, 1]} : vector<2x512xf32> to vector<2x128xf32>
    %63 = math.tanh %62 : vector<2x128xf32>
    %64 = arith.mulf %60, %44 : vector<2x128xf32>
    %65 = arith.mulf %59, %63 : vector<2x128xf32>
    %66 = arith.addf %64, %65 : vector<2x128xf32>
    %67 = math.tanh %66 : vector<2x128xf32>
    %68 = arith.mulf %61, %67 : vector<2x128xf32>
    %c1_35 = arith.constant 1 : index
    %c0_36 = arith.constant 0 : index
    %c0_37 = arith.constant 0 : index
    %69 = vector.load %arg9[%c1_35, %c0_36, %c0_37] : memref<2x2x128xf32, #tpu.memory_space<vmem>>, vector<1x2x128xf32>
    %70 = vector.shape_cast %69 : vector<1x2x128xf32> to vector<2x128xf32>
    %71 = vector.shape_cast %68 : vector<2x128xf32> to vector<1x2x128xf32>
    tpu.vector_store %arg9[%c1_35, %c0_36, %c0_37], %71 {strides = array<i32>} : memref<2x2x128xf32, #tpu.memory_space<vmem>>, vector<1x2x128xf32>,
    %c1_38 = arith.constant 1 : index
    %c0_39 = arith.constant 0 : index
    %c0_40 = arith.constant 0 : index
    %72 = vector.load %arg10[%c1_38, %c0_39, %c0_40] : memref<2x2x128xf32, #tpu.memory_space<vmem>>, vector<1x2x128xf32>
    %73 = vector.shape_cast %72 : vector<1x2x128xf32> to vector<2x128xf32>
    %74 = vector.shape_cast %66 : vector<2x128xf32> to vector<1x2x128xf32>
    tpu.vector_store %arg10[%c1_38, %c0_39, %c0_40], %74 {strides = array<i32>} : memref<2x2x128xf32, #tpu.memory_space<vmem>>, vector<1x2x128xf32>,
    %c0_41 = arith.constant 0 : index
    %c0_42 = arith.constant 0 : index
    %75 = vector.load %arg6[%c0_41, %c0_42] : memref<128x128xf32, #tpu.memory_space<vmem>>, vector<128x128xf32>
    %cst_43 = arith.constant dense<0.000000e+00> : vector<2x128xf32>
    %76 = tpu.matmul %68, %75, %cst_43 {dimension_numbers = #tpu.dot_dimension_numbers<[1], [0], [0], [1], [0, 0, 1, 1], [], []>} : vector<2x128xf32>, vector<128x128xf32>, vector<2x128xf32> -> vector<2x128xf32>
    %c0_44 = arith.constant 0 : index
    %c0_45 = arith.constant 0 : index
    %77 = vector.load %arg7[%c0_44, %c0_45] : memref<1x128xf32, #tpu.memory_space<vmem>>, vector<1x128xf32>
    %78 = vector.broadcast %77 : vector<1x128xf32> to vector<2x128xf32>
    %79 = arith.addf %76, %78 : vector<2x128xf32>
    %c0_46 = arith.constant 0 : index
    %c0_47 = arith.constant 0 : index
    %80 = vector.load %arg8[%c0_46, %c0_47] : memref<2x128xf32, #tpu.memory_space<vmem>>, vector<2x128xf32>
    tpu.vector_store %arg8[%c0_46, %c0_47], %79 {strides = array<i32>} : memref<2x128xf32, #tpu.memory_space<vmem>>, vector<2x128xf32>,
    return
  }
}

</mosaic_0001>

<llo_original>
// kernel: tpu_custom_call.1
$region0: #{tpu_custom_call.1}
  #allocation0 [shape = 'u32[]', space=smem, size = 0x4, offset = 0x4, fixed_abs, tag = 'smem constant byte address 0x4 - core index']
  #allocation1 [shape = 'u32[72,128]{1,0:T(1,128)}', space=vmem, size = 0x9000, scoped, tag = 'internal scratch']
  %s0 = inlined_call_operand.vmem [shape: s32[2], index: 0, kind: input, shape index: {}]
  %s1 = inlined_call_operand.hbm [shape: f32[50,128], index: 1, kind: input, shape index: {}]
  %s2 = inlined_call_operand.hbm [shape: f32[2,2,128], index: 2, kind: input, shape index: {}, may-alias: {2,9}]
  %s3 = inlined_call_operand.hbm [shape: f32[2,2,128], index: 3, kind: input, shape index: {}, may-alias: {3,10}]
  %s4 = inlined_call_operand.hbm [shape: f32[2,256,512], index: 4, kind: input, shape index: {}]
  %s5 = inlined_call_operand.vmem [shape: f32[2,1,512], index: 5, kind: input, shape index: {}]
  %s6 = inlined_call_operand.hbm [shape: f32[128,128], index: 6, kind: input, shape index: {}]
  %s7 = inlined_call_operand.vmem [shape: f32[1,128], index: 7, kind: input, shape index: {}]
  %s8 = inlined_call_operand.hbm [shape: f32[2,128], index: 8, kind: output, shape index: {0}]
  %s9 = inlined_call_operand.hbm [shape: f32[2,2,128], index: 9, kind: output, shape index: {1}, may-alias: {2,9}]
  %s10 = inlined_call_operand.hbm [shape: f32[2,2,128], index: 10, kind: output, shape index: {2}, may-alias: {3,10}]
  %11 = xla_tuple %s8, %s9, %s10
  %s12 = sld [smem:[#allocation0]]
  $region82: #{tpu_custom_call.1} parent=0
    _
  %s14 = ssub.s32 1, %s12
  %s15 = scalar_select 0, %s14, %s12
  $region1: #{tpu_custom_call.1} parent=0
    #allocation2 [shape = 'u8[512]{0}', space=smem, size = 0x200, scoped, tag = 'input window, operand 0, single buffered']
    #allocation3 [shape = 's32[1]{0}', space=sflag, size = 0x4, scoped, tag = 'scoped memory for tpu_custom_call.1']
    #allocation4 [shape = 's32[1]{0}', space=sflag, size = 0x4, scoped, tag = 'scoped memory for tpu_custom_call.1']
    #allocation5 [shape = 's32[1]{0}', space=sflag, size = 0x4, scoped, tag = 'scoped memory for tpu_custom_call.1']
    #allocation6 [shape = 'u8[28672]{0}', space=vmem, size = 0x7000, scoped, tag = 'input window, operand 1, single buffered']
    #allocation7 [shape = 'u8[2048]{0}', space=vmem, size = 0x800, scoped, tag = 'input window, operand 2, single buffered']
    #allocation8 [shape = 's32[1]{0}', space=sflag, size = 0x4, scoped, tag = 'scoped memory for tpu_custom_call.1']
    #allocation9 [shape = 'u8[2048]{0}', space=vmem, size = 0x800, scoped, tag = 'input window, operand 3, single buffered']
    #allocation10 [shape = 'u8[1048576]{0}', space=vmem, size = 0x100000, scoped, tag = 'input window, operand 4, single buffered']
    #allocation11 [shape = 's32[1]{0}', space=sflag, size = 0x4, scoped, tag = 'scoped memory for tpu_custom_call.1']
    #allocation12 [shape = 'u8[65536]{0}', space=vmem, size = 0x10000, scoped, tag = 'input window, operand 6, single buffered']
    #allocation13 [shape = 'u8[1024]{0}', space=vmem, size = 0x400, scoped, tag = 'output window, operand 0, single buffered']
    #allocation14 [shape = 'u8[2048]{0}', space=vmem, size = 0x800, scoped, tag = 'output window, operand 1, single buffered']
    #allocation15 [shape = 's32[1]{0}', space=sflag, size = 0x4, scoped, tag = 'scoped memory for tpu_custom_call.1']
    #allocation16 [shape = 'u8[2048]{0}', space=vmem, size = 0x800, scoped, tag = 'output window, operand 2, single buffered']
    %16 = vsyncpa [#allocation5], 0
    %17 = vsyncpa [#allocation3], 0
    %18 = vsyncpa [#allocation8], 0
    %19 = vsyncpa [#allocation11], 0
    %20 = vsyncpa [#allocation4], 0
    %21 = vsyncpa [#allocation15], 0
    // Predicated region
    $region2: #{tpu_custom_call.1} parent=1 // pred_check
      _
    $region3: #{tpu_custom_call.1} parent=1 // pred_check_branch
      %23 = sbr.rel (0) target = $region5
    $region4: #{tpu_custom_call.1} parent=1 // pred_region
      %25 = vsyncadd [#allocation5], 0
      %s27 = sshll.u32 %s0, 4
      %s28 = int_to_ptr.vmem [resolvable:$true] %s27
      %30 = dma.vmem_to_smem %s28, 16, [#allocation2], [#allocation5]
    $region5: #{tpu_custom_call.1} parent=1 // pred_fallthru
      _
    // Predicated region
    $region6: #{tpu_custom_call.1} parent=1 // pred_check
      _
    $region7: #{tpu_custom_call.1} parent=1 // pred_check_branch
      %32 = sbr.rel (0) target = $region9
    $region8: #{tpu_custom_call.1} parent=1 // pred_region
      %34 = vsyncadd [#allocation3], 0
      %s35 = sshll.u32 %s1, 4
      %s36 = int_to_ptr.hbm [resolvable:$true] %s35
      %s37 = sshll.u32 [#allocation6], 4
      %s38 = int_to_ptr.vmem [resolvable:$true] %s37
      %43 = dma.hbm_to_vmem [thread:$0]  %s36, 896, %s38, [#allocation3], 128, 128, 8
    $region9: #{tpu_custom_call.1} parent=1 // pred_fallthru
      _
    // Predicated region
    $region10: #{tpu_custom_call.1} parent=1 // pred_check
      _
    $region11: #{tpu_custom_call.1} parent=1 // pred_check_branch
      %45 = sbr.rel (0) target = $region13
    $region12: #{tpu_custom_call.1} parent=1 // pred_region
      %47 = vsyncadd [#allocation8], 0
      %s48 = sshll.u32 %s2, 4
      %s49 = int_to_ptr.hbm [resolvable:$true] %s48
      %s50 = sshll.u32 [#allocation7], 4
      %s51 = int_to_ptr.vmem [resolvable:$true] %s50
      %56 = dma.hbm_to_vmem [thread:$0]  %s49, 64, %s51, [#allocation8], 32, 32, 2
    $region13: #{tpu_custom_call.1} parent=1 // pred_fallthru
      _
    // Predicated region
    $region14: #{tpu_custom_call.1} parent=1 // pred_check
      _
    $region15: #{tpu_custom_call.1} parent=1 // pred_check_branch
      %58 = sbr.rel (0) target = $region17
    $region16: #{tpu_custom_call.1} parent=1 // pred_region
      %60 = vsyncadd [#allocation8], 0
      %s61 = sshll.u32 %s3, 4
      %s62 = int_to_ptr.hbm [resolvable:$true] %s61
      %s63 = sshll.u32 [#allocation9], 4
      %s64 = int_to_ptr.vmem [resolvable:$true] %s63
      %69 = dma.hbm_to_vmem [thread:$0]  %s62, 64, %s64, [#allocation8], 32, 32, 2
    $region17: #{tpu_custom_call.1} parent=1 // pred_fallthru
      _
    // Predicated region
    $region18: #{tpu_custom_call.1} parent=1 // pred_check
      _
    $region19: #{tpu_custom_call.1} parent=1 // pred_check_branch
      %71 = sbr.rel (0) target = $region21
    $region20: #{tpu_custom_call.1} parent=1 // pred_region
      %73 = vsyncadd [#allocation11], 0
      %s74 = sshll.u32 %s4, 4
      %s75 = int_to_ptr.hbm [resolvable:$true] %s74
      %s76 = sshll.u32 [#allocation10], 4
      %s77 = int_to_ptr.vmem [resolvable:$true] %s76
      %82 = dma.hbm_to_vmem [thread:$0]  %s75, 32768, %s77, [#allocation11], 512, 512, 32
    $region21: #{tpu_custom_call.1} parent=1 // pred_fallthru
      _
    // Predicated region
    $region22: #{tpu_custom_call.1} parent=1 // pred_check
      _
    $region23: #{tpu_custom_call.1} parent=1 // pred_check_branch
      %84 = sbr.rel (0) target = $region25
    $region24: #{tpu_custom_call.1} parent=1 // pred_region
      _
    $region25: #{tpu_custom_call.1} parent=1 // pred_fallthru
      _
    // Predicated region
    $region26: #{tpu_custom_call.1} parent=1 // pred_check
      _
    $region27: #{tpu_custom_call.1} parent=1 // pred_check_branch
      %86 = sbr.rel (0) target = $region29
    $region28: #{tpu_custom_call.1} parent=1 // pred_region
      %88 = vsyncadd [#allocation11], 0
      %s89 = sshll.u32 %s6, 4
      %s90 = int_to_ptr.hbm [resolvable:$true] %s89
      %s91 = sshll.u32 [#allocation12], 4
      %s92 = int_to_ptr.vmem [resolvable:$true] %s91
      %97 = dma.hbm_to_vmem [thread:$0]  %s90, 2048, %s92, [#allocation11], 128, 128, 8
    $region29: #{tpu_custom_call.1} parent=1 // pred_fallthru
      _
    // Predicated region
    $region30: #{tpu_custom_call.1} parent=1 // pred_check
      _
    $region31: #{tpu_custom_call.1} parent=1 // pred_check_branch
      %99 = sbr.rel (0) target = $region33
    $region32: #{tpu_custom_call.1} parent=1 // pred_region
      _
    $region33: #{tpu_custom_call.1} parent=1 // pred_fallthru
      _
    // Predicated region
    $region34: #{tpu_custom_call.1} parent=1 // pred_check
      _
    $region35: #{tpu_custom_call.1} parent=1 // pred_check_branch
      %101 = sbr.rel (0) target = $region37
    $region36: #{tpu_custom_call.1} parent=1 // pred_region
      %103 = dma.done [#allocation5], 16
    $region37: #{tpu_custom_call.1} parent=1 // pred_fallthru
      _
    // Predicated region
    $region38: #{tpu_custom_call.1} parent=1 // pred_check
      _
    $region39: #{tpu_custom_call.1} parent=1 // pred_check_branch
      %105 = sbr.rel (0) target = $region41
    $region40: #{tpu_custom_call.1} parent=1 // pred_region
      %107 = dma.done [#allocation3], 896
    $region41: #{tpu_custom_call.1} parent=1 // pred_fallthru
      _
    // Predicated region
    $region42: #{tpu_custom_call.1} parent=1 // pred_check
      _
    $region43: #{tpu_custom_call.1} parent=1 // pred_check_branch
      %109 = sbr.rel (0) target = $region45
    $region44: #{tpu_custom_call.1} parent=1 // pred_region
      %111 = dma.done [#allocation8], 64
    $region45: #{tpu_custom_call.1} parent=1 // pred_fallthru
      _
    // Predicated region
    $region46: #{tpu_custom_call.1} parent=1 // pred_check
      _
    $region47: #{tpu_custom_call.1} parent=1 // pred_check_branch
      %113 = sbr.rel (0) target = $region49
    $region48: #{tpu_custom_call.1} parent=1 // pred_region
      %115 = dma.done [#allocation8], 64
    $region49: #{tpu_custom_call.1} parent=1 // pred_fallthru
      _
    // Predicated region
    $region50: #{tpu_custom_call.1} parent=1 // pred_check
      _
    $region51: #{tpu_custom_call.1} parent=1 // pred_check_branch
      %117 = sbr.rel (0) target = $region53
    $region52: #{tpu_custom_call.1} parent=1 // pred_region
      %119 = dma.done [#allocation11], 32768
    $region53: #{tpu_custom_call.1} parent=1 // pred_fallthru
      _
    // Predicated region
    $region54: #{tpu_custom_call.1} parent=1 // pred_check
      _
    $region55: #{tpu_custom_call.1} parent=1 // pred_check_branch
      %121 = sbr.rel (0) target = $region57
    $region56: #{tpu_custom_call.1} parent=1 // pred_region
      %123 = dma.done [#allocation11], 2048
    $region57: #{tpu_custom_call.1} parent=1 // pred_fallthru
      _
    %124 = sfence
    %s125 = sld [smem:[#allocation2]]
    %s126 = scalar_lea.vmem [#allocation6], %s125
    %v127 = vld [vmem:[%s126] sm:$0x1]
    %s128 = sld [smem:[#allocation2 + $0x1]]
    %s129 = scalar_lea.vmem [#allocation6], %s128
    %v130 = vld [vmem:[%s129] sm:$0x1]
    %v132 = vrot.slane %v130, 7
    %vm134 = vcmask 1040384
    %v135 = vsel %vm134, %v127, %v132
    %v136 = vld [vmem:[#allocation7] sm:$0x3]
    %v137 = vld [vmem:[#allocation9] sm:$0x3]
    %v138 = vld [vmem:[#allocation10] sm:$0xff]
    %v139 = vld [vmem:[#allocation10 + $0x8] sm:$0xff]
    %v140 = vld [vmem:[#allocation10 + $0x10] sm:$0xff]
    %v141 = vld [vmem:[#allocation10 + $0x18] sm:$0xff]
    %v142 = vld [vmem:[#allocation10 + $0x20] sm:$0xff]
    %v143 = vld [vmem:[#allocation10 + $0x28] sm:$0xff]
    %v144 = vld [vmem:[#allocation10 + $0x30] sm:$0xff]
    %v145 = vld [vmem:[#allocation10 + $0x38] sm:$0xff]
    %v146 = vld [vmem:[#allocation10 + $0x40] sm:$0xff]
    %v147 = vld [vmem:[#allocation10 + $0x48] sm:$0xff]
    %v148 = vld [vmem:[#allocation10 + $0x50] sm:$0xff]
    %v149 = vld [vmem:[#allocation10 + $0x58] sm:$0xff]
    %v150 = vld [vmem:[#allocation10 + $0x60] sm:$0xff]
    %v151 = vld [vmem:[#allocation10 + $0x68] sm:$0xff]
    %v152 = vld [vmem:[#allocation10 + $0x70] sm:$0xff]
    %v153 = vld [vmem:[#allocation10 + $0x78] sm:$0xff]
    %v154 = vld [vmem:[#allocation10 + $0x80] sm:$0xff]
    %v155 = vld [vmem:[#allocation10 + $0x88] sm:$0xff]
    %v156 = vld [vmem:[#allocation10 + $0x90] sm:$0xff]
    %v157 = vld [vmem:[#allocation10 + $0x98] sm:$0xff]
    %v158 = vld [vmem:[#allocation10 + $0xa0] sm:$0xff]
    %v159 = vld [vmem:[#allocation10 + $0xa8] sm:$0xff]
    %v160 = vld [vmem:[#allocation10 + $0xb0] sm:$0xff]
    %v161 = vld [vmem:[#allocation10 + $0xb8] sm:$0xff]
    %v162 = vld [vmem:[#allocation10 + $0xc0] sm:$0xff]
    %v163 = vld [vmem:[#allocation10 + $0xc8] sm:$0xff]
    %v164 = vld [vmem:[#allocation10 + $0xd0] sm:$0xff]
    %v165 = vld [vmem:[#allocation10 + $0xd8] sm:$0xff]
    %v166 = vld [vmem:[#allocation10 + $0xe0] sm:$0xff]
    %v167 = vld [vmem:[#allocation10 + $0xe8] sm:$0xff]
    %v168 = vld [vmem:[#allocation10 + $0xf0] sm:$0xff]
    %v169 = vld [vmem:[#allocation10 + $0xf8] sm:$0xff]
    %v170 = vld [vmem:[#allocation10 + $0x100] sm:$0xff]
    %v171 = vld [vmem:[#allocation10 + $0x108] sm:$0xff]
    %v172 = vld [vmem:[#allocation10 + $0x110] sm:$0xff]
    %v173 = vld [vmem:[#allocation10 + $0x118] sm:$0xff]
    %v174 = vld [vmem:[#allocation10 + $0x120] sm:$0xff]
    %v175 = vld [vmem:[#allocation10 + $0x128] sm:$0xff]
    %v176 = vld [vmem:[#allocation10 + $0x130] sm:$0xff]
    %v177 = vld [vmem:[#allocation10 + $0x138] sm:$0xff]
    %v178 = vld [vmem:[#allocation10 + $0x140] sm:$0xff]
    %v179 = vld [vmem:[#allocation10 + $0x148] sm:$0xff]
    %v180 = vld [vmem:[#allocation10 + $0x150] sm:$0xff]
    %v181 = vld [vmem:[#allocation10 + $0x158] sm:$0xff]
    %v182 = vld [vmem:[#allocation10 + $0x160] sm:$0xff]
    %v183 = vld [vmem:[#allocation10 + $0x168] sm:$0xff]
    %v184 = vld [vmem:[#allocation10 + $0x170] sm:$0xff]
    %v185 = vld [vmem:[#allocation10 + $0x178] sm:$0xff]
    %v186 = vld [vmem:[#allocation10 + $0x180] sm:$0xff]
    %v187 = vld [vmem:[#allocation10 + $0x188] sm:$0xff]
    %v188 = vld [vmem:[#allocation10 + $0x190] sm:$0xff]
    %v189 = vld [vmem:[#allocation10 + $0x198] sm:$0xff]
    %v190 = vld [vmem:[#allocation10 + $0x1a0] sm:$0xff]
    %v191 = vld [vmem:[#allocation10 + $0x1a8] sm:$0xff]
    %v192 = vld [vmem:[#allocation10 + $0x1b0] sm:$0xff]
    %v193 = vld [vmem:[#allocation10 + $0x1b8] sm:$0xff]
    %v194 = vld [vmem:[#allocation10 + $0x1c0] sm:$0xff]
    %v195 = vld [vmem:[#allocation10 + $0x1c8] sm:$0xff]
    %v196 = vld [vmem:[#allocation10 + $0x1d0] sm:$0xff]
    %v197 = vld [vmem:[#allocation10 + $0x1d8] sm:$0xff]
    %v198 = vld [vmem:[#allocation10 + $0x1e0] sm:$0xff]
    %v199 = vld [vmem:[#allocation10 + $0x1e8] sm:$0xff]
    %v200 = vld [vmem:[#allocation10 + $0x1f0] sm:$0xff]
    %v201 = vld [vmem:[#allocation10 + $0x1f8] sm:$0xff]
    %v202 = vld [vmem:[#allocation10 + $0x200] sm:$0xff]
    %v203 = vld [vmem:[#allocation10 + $0x208] sm:$0xff]
    %v204 = vld [vmem:[#allocation10 + $0x210] sm:$0xff]
    %v205 = vld [vmem:[#allocation10 + $0x218] sm:$0xff]
    %v206 = vld [vmem:[#allocation10 + $0x220] sm:$0xff]
    %v207 = vld [vmem:[#allocation10 + $0x228] sm:$0xff]
    %v208 = vld [vmem:[#allocation10 + $0x230] sm:$0xff]
    %v209 = vld [vmem:[#allocation10 + $0x238] sm:$0xff]
    %v210 = vld [vmem:[#allocation10 + $0x240] sm:$0xff]
    %v211 = vld [vmem:[#allocation10 + $0x248] sm:$0xff]
    %v212 = vld [vmem:[#allocation10 + $0x250] sm:$0xff]
    %v213 = vld [vmem:[#allocation10 + $0x258] sm:$0xff]
    %v214 = vld [vmem:[#allocation10 + $0x260] sm:$0xff]
    %v215 = vld [vmem:[#allocation10 + $0x268] sm:$0xff]
    %v216 = vld [vmem:[#allocation10 + $0x270] sm:$0xff]
    %v217 = vld [vmem:[#allocation10 + $0x278] sm:$0xff]
    %v218 = vld [vmem:[#allocation10 + $0x280] sm:$0xff]
    %v219 = vld [vmem:[#allocation10 + $0x288] sm:$0xff]
    %v220 = vld [vmem:[#allocation10 + $0x290] sm:$0xff]
    %v221 = vld [vmem:[#allocation10 + $0x298] sm:$0xff]
    %v222 = vld [vmem:[#allocation10 + $0x2a0] sm:$0xff]
    %v223 = vld [vmem:[#allocation10 + $0x2a8] sm:$0xff]
    %v224 = vld [vmem:[#allocation10 + $0x2b0] sm:$0xff]
    %v225 = vld [vmem:[#allocation10 + $0x2b8] sm:$0xff]
    %v226 = vld [vmem:[#allocation10 + $0x2c0] sm:$0xff]
    %v227 = vld [vmem:[#allocation10 + $0x2c8] sm:$0xff]
    %v228 = vld [vmem:[#allocation10 + $0x2d0] sm:$0xff]
    %v229 = vld [vmem:[#allocation10 + $0x2d8] sm:$0xff]
    %v230 = vld [vmem:[#allocation10 + $0x2e0] sm:$0xff]
    %v231 = vld [vmem:[#allocation10 + $0x2e8] sm:$0xff]
    %v232 = vld [vmem:[#allocation10 + $0x2f0] sm:$0xff]
    %v233 = vld [vmem:[#allocation10 + $0x2f8] sm:$0xff]
    %v234 = vld [vmem:[#allocation10 + $0x300] sm:$0xff]
    %v235 = vld [vmem:[#allocation10 + $0x308] sm:$0xff]
    %v236 = vld [vmem:[#allocation10 + $0x310] sm:$0xff]
    %v237 = vld [vmem:[#allocation10 + $0x318] sm:$0xff]
    %v238 = vld [vmem:[#allocation10 + $0x320] sm:$0xff]
    %v239 = vld [vmem:[#allocation10 + $0x328] sm:$0xff]
    %v240 = vld [vmem:[#allocation10 + $0x330] sm:$0xff]
    %v241 = vld [vmem:[#allocation10 + $0x338] sm:$0xff]
    %v242 = vld [vmem:[#allocation10 + $0x340] sm:$0xff]
    %v243 = vld [vmem:[#allocation10 + $0x348] sm:$0xff]
    %v244 = vld [vmem:[#allocation10 + $0x350] sm:$0xff]
    %v245 = vld [vmem:[#allocation10 + $0x358] sm:$0xff]
    %v246 = vld [vmem:[#allocation10 + $0x360] sm:$0xff]
    %v247 = vld [vmem:[#allocation10 + $0x368] sm:$0xff]
    %v248 = vld [vmem:[#allocation10 + $0x370] sm:$0xff]
    %v249 = vld [vmem:[#allocation10 + $0x378] sm:$0xff]
    %v250 = vld [vmem:[#allocation10 + $0x380] sm:$0xff]
    %v251 = vld [vmem:[#allocation10 + $0x388] sm:$0xff]
    %v252 = vld [vmem:[#allocation10 + $0x390] sm:$0xff]
    %v253 = vld [vmem:[#allocation10 + $0x398] sm:$0xff]
    %v254 = vld [vmem:[#allocation10 + $0x3a0] sm:$0xff]
    %v255 = vld [vmem:[#allocation10 + $0x3a8] sm:$0xff]
    %v256 = vld [vmem:[#allocation10 + $0x3b0] sm:$0xff]
    %v257 = vld [vmem:[#allocation10 + $0x3b8] sm:$0xff]
    %v258 = vld [vmem:[#allocation10 + $0x3c0] sm:$0xff]
    %v259 = vld [vmem:[#allocation10 + $0x3c8] sm:$0xff]
    %v260 = vld [vmem:[#allocation10 + $0x3d0] sm:$0xff]
    %v261 = vld [vmem:[#allocation10 + $0x3d8] sm:$0xff]
    %v262 = vld [vmem:[#allocation10 + $0x3e0] sm:$0xff]
    %v263 = vld [vmem:[#allocation10 + $0x3e8] sm:$0xff]
    %v264 = vld [vmem:[#allocation10 + $0x3f0] sm:$0xff]
    %v265 = vld [vmem:[#allocation10 + $0x3f8] sm:$0xff]
    %v266 = vld [vmem:[%s5] sm:$0xf]
    %v268 = vperm.slane %v266, 0
    %v269 = vperm.slane %v266, 1
    %v270 = vperm.slane %v266, 2
    %v271 = vperm.slane %v266, 3
    %276 = vmatpush.msra.mxu0 %v198
    %277 = vmatpush.msra.mxu0 %v194
    %278 = vmatpush.msra.mxu0 %v190
    %279 = vmatpush.msra.mxu0 %v186
    %280 = vmatpush.msra.mxu0 %v182
    %281 = vmatpush.msra.mxu0 %v178
    %282 = vmatpush.msra.mxu0 %v174
    %283 = vmatpush.msra.mxu0 %v170
    %284 = vmatpush.msra.mxu0 %v166
    %285 = vmatpush.msra.mxu0 %v162
    %286 = vmatpush.msra.mxu0 %v158
    %287 = vmatpush.msra.mxu0 %v154
    %288 = vmatpush.msra.mxu0 %v150
    %289 = vmatpush.msra.mxu0 %v146
    %290 = vmatpush.msra.mxu0 %v142
    %291 = vmatpush.msra.mxu0 %v138
    %292 = vmatmul.f32.gmra.mxu0 %v135
    %v293 = vpop.f32.mrf.mxu0
    %v294 = vadd.f32 %v268, %v293
    %295 = vdwg.mxu0
    %296 = vmatpush.msra.mxu0 %v262
    %297 = vmatpush.msra.mxu0 %v258
    %298 = vmatpush.msra.mxu0 %v254
    %299 = vmatpush.msra.mxu0 %v250
    %300 = vmatpush.msra.mxu0 %v246
    %301 = vmatpush.msra.mxu0 %v242
    %302 = vmatpush.msra.mxu0 %v238
    %303 = vmatpush.msra.mxu0 %v234
    %304 = vmatpush.msra.mxu0 %v230
    %305 = vmatpush.msra.mxu0 %v226
    %306 = vmatpush.msra.mxu0 %v222
    %307 = vmatpush.msra.mxu0 %v218
    %308 = vmatpush.msra.mxu0 %v214
    %309 = vmatpush.msra.mxu0 %v210
    %310 = vmatpush.msra.mxu0 %v206
    %311 = vmatpush.msra.mxu0 %v202
    %312 = vmatmul.f32.gmra.mxu0 %v136
    %v313 = vpop.f32.mrf.mxu0
    %v314 = vadd.f32 %v294, %v313
    %315 = vdwg.mxu0
    %316 = vmatpush.msra.mxu0 %v199
    %317 = vmatpush.msra.mxu0 %v195
    %318 = vmatpush.msra.mxu0 %v191
    %319 = vmatpush.msra.mxu0 %v187
    %320 = vmatpush.msra.mxu0 %v183
    %321 = vmatpush.msra.mxu0 %v179
    %322 = vmatpush.msra.mxu0 %v175
    %323 = vmatpush.msra.mxu0 %v171
    %324 = vmatpush.msra.mxu0 %v167
    %325 = vmatpush.msra.mxu0 %v163
    %326 = vmatpush.msra.mxu0 %v159
    %327 = vmatpush.msra.mxu0 %v155
    %328 = vmatpush.msra.mxu0 %v151
    %329 = vmatpush.msra.mxu0 %v147
    %330 = vmatpush.msra.mxu0 %v143
    %331 = vmatpush.msra.mxu0 %v139
    %332 = vmatmul.f32.gmra.mxu0 %v135
    %v333 = vpop.f32.mrf.mxu0
    %v334 = vadd.f32 %v269, %v333
    %335 = vdwg.mxu0
    %336 = vmatpush.msra.mxu0 %v263
    %337 = vmatpush.msra.mxu0 %v259
    %338 = vmatpush.msra.mxu0 %v255
    %339 = vmatpush.msra.mxu0 %v251
    %340 = vmatpush.msra.mxu0 %v247
    %341 = vmatpush.msra.mxu0 %v243
    %342 = vmatpush.msra.mxu0 %v239
    %343 = vmatpush.msra.mxu0 %v235
    %344 = vmatpush.msra.mxu0 %v231
    %345 = vmatpush.msra.mxu0 %v227
    %346 = vmatpush.msra.mxu0 %v223
    %347 = vmatpush.msra.mxu0 %v219
    %348 = vmatpush.msra.mxu0 %v215
    %349 = vmatpush.msra.mxu0 %v211
    %350 = vmatpush.msra.mxu0 %v207
    %351 = vmatpush.msra.mxu0 %v203
    %352 = vmatmul.f32.gmra.mxu0 %v136
    %v353 = vpop.f32.mrf.mxu0
    %v354 = vadd.f32 %v334, %v353
    %355 = vdwg.mxu0
    %356 = vmatpush.msra.mxu0 %v200
    %357 = vmatpush.msra.mxu0 %v196
    %358 = vmatpush.msra.mxu0 %v192
    %359 = vmatpush.msra.mxu0 %v188
    %360 = vmatpush.msra.mxu0 %v184
    %361 = vmatpush.msra.mxu0 %v180
    %362 = vmatpush.msra.mxu0 %v176
    %363 = vmatpush.msra.mxu0 %v172
    %364 = vmatpush.msra.mxu0 %v168
    %365 = vmatpush.msra.mxu0 %v164
    %366 = vmatpush.msra.mxu0 %v160
    %367 = vmatpush.msra.mxu0 %v156
    %368 = vmatpush.msra.mxu0 %v152
    %369 = vmatpush.msra.mxu0 %v148
    %370 = vmatpush.msra.mxu0 %v144
    %371 = vmatpush.msra.mxu0 %v140
    %372 = vmatmul.f32.gmra.mxu0 %v135
    %v373 = vpop.f32.mrf.mxu0
    %v374 = vadd.f32 %v270, %v373
    %375 = vdwg.mxu0
    %376 = vmatpush.msra.mxu0 %v264
    %377 = vmatpush.msra.mxu0 %v260
    %378 = vmatpush.msra.mxu0 %v256
    %379 = vmatpush.msra.mxu0 %v252
    %380 = vmatpush.msra.mxu0 %v248
    %381 = vmatpush.msra.mxu0 %v244
    %382 = vmatpush.msra.mxu0 %v240
    %383 = vmatpush.msra.mxu0 %v236
    %384 = vmatpush.msra.mxu0 %v232
    %385 = vmatpush.msra.mxu0 %v228
    %386 = vmatpush.msra.mxu0 %v224
    %387 = vmatpush.msra.mxu0 %v220
    %388 = vmatpush.msra.mxu0 %v216
    %389 = vmatpush.msra.mxu0 %v212
    %390 = vmatpush.msra.mxu0 %v208
    %391 = vmatpush.msra.mxu0 %v204
    %392 = vmatmul.f32.gmra.mxu0 %v136
    %v393 = vpop.f32.mrf.mxu0
    %v394 = vadd.f32 %v374, %v393
    %395 = vdwg.mxu0
    %396 = vmatpush.msra.mxu0 %v201
    %397 = vmatpush.msra.mxu0 %v197
    %398 = vmatpush.msra.mxu0 %v193
    %399 = vmatpush.msra.mxu0 %v189
    %400 = vmatpush.msra.mxu0 %v185
    %401 = vmatpush.msra.mxu0 %v181
    %402 = vmatpush.msra.mxu0 %v177
    %403 = vmatpush.msra.mxu0 %v173
    %404 = vmatpush.msra.mxu0 %v169
    %405 = vmatpush.msra.mxu0 %v165
    %406 = vmatpush.msra.mxu0 %v161
    %407 = vmatpush.msra.mxu0 %v157
    %408 = vmatpush.msra.mxu0 %v153
    %409 = vmatpush.msra.mxu0 %v149
    %410 = vmatpush.msra.mxu0 %v145
    %411 = vmatpush.msra.mxu0 %v141
    %412 = vmatmul.f32.gmra.mxu0 %v135
    %v413 = vpop.f32.mrf.mxu0
    %v414 = vadd.f32 %v271, %v413
    %415 = vdwg.mxu0
    %416 = vmatpush.msra.mxu0 %v265
    %417 = vmatpush.msra.mxu0 %v261
    %418 = vmatpush.msra.mxu0 %v257
    %419 = vmatpush.msra.mxu0 %v253
    %420 = vmatpush.msra.mxu0 %v249
    %421 = vmatpush.msra.mxu0 %v245
    %422 = vmatpush.msra.mxu0 %v241
    %423 = vmatpush.msra.mxu0 %v237
    %424 = vmatpush.msra.mxu0 %v233
    %425 = vmatpush.msra.mxu0 %v229
    %426 = vmatpush.msra.mxu0 %v225
    %427 = vmatpush.msra.mxu0 %v221
    %428 = vmatpush.msra.mxu0 %v217
    %429 = vmatpush.msra.mxu0 %v213
    %430 = vmatpush.msra.mxu0 %v209
    %431 = vmatpush.msra.mxu0 %v205
    %432 = vmatmul.f32.gmra.mxu0 %v136
    %v433 = vpop.f32.mrf.mxu0
    %v434 = vadd.f32 %v414, %v433
    %435 = vdwg.mxu0
    %v436 = vxor.u32 %v314, 2147483648
    %v437 = vxor.u32 %v354, 2147483648
    %v438 = vxor.u32 %v394, 2147483648
    %v439 = vmul.f32 %v436, 1.442695
    %v440 = vpow.pop %v439
    %v441 = vmul.f32 %v437, 1.442695
    %v442 = vpow.pop %v441
    %v443 = vmul.f32 %v438, 1.442695
    %v444 = vpow.pop %v443
    %v445 = vadd.f32 %v440, 1.0
    %v446 = vadd.f32 %v442, 1.0
    %v447 = vadd.f32 %v444, 1.0
    %v448 = vrcp.pop %v445
    %v449 = vmul.f32 %v445, %v448
    %v450 = vsub.f32 1.0, %v449
    %v451 = vmul.f32 %v448, %v450
    %v452 = vadd.f32 %v448, %v451
    %vm453 = vweird.f32 %v445
    %vm454 = vweird.f32 %v448
    %vm455 = vmor %vm453, %vm454
    %v456 = vsel %vm455, %v448, %v452
    %v457 = vand.u32 2147483647, %v445
    %vm458 = vcmp.eq.f32.partialorder %v457, 8.507059e+37
    %v459 = vand.u32 %v445, 2147483648
    %v460 = vor.u32 1.1754944e-38, %v459
    %v461 = vsel %vm458, %v460, %v456
    %v462 = vmul.f32 1.0, %v461
    %v463 = vrcp.pop %v446
    %v464 = vmul.f32 %v446, %v463
    %v465 = vsub.f32 1.0, %v464
    %v466 = vmul.f32 %v463, %v465
    %v467 = vadd.f32 %v463, %v466
    %vm468 = vweird.f32 %v446
    %vm469 = vweird.f32 %v463
    %vm470 = vmor %vm468, %vm469
    %v471 = vsel %vm470, %v463, %v467
    %v472 = vand.u32 2147483647, %v446
    %vm473 = vcmp.eq.f32.partialorder %v472, 8.507059e+37
    %v474 = vand.u32 %v446, 2147483648
    %v475 = vor.u32 1.1754944e-38, %v474
    %v476 = vsel %vm473, %v475, %v471
    %v477 = vmul.f32 1.0, %v476
    %v478 = vrcp.pop %v447
    %v479 = vmul.f32 %v447, %v478
    %v480 = vsub.f32 1.0, %v479
    %v481 = vmul.f32 %v478, %v480
    %v482 = vadd.f32 %v478, %v481
    %vm483 = vweird.f32 %v447
    %vm484 = vweird.f32 %v478
    %vm485 = vmor %vm483, %vm484
    %v486 = vsel %vm485, %v478, %v482
    %v487 = vand.u32 2147483647, %v447
    %vm488 = vcmp.eq.f32.partialorder %v487, 8.507059e+37
    %v489 = vand.u32 %v447, 2147483648
    %v490 = vor.u32 1.1754944e-38, %v489
    %v491 = vsel %vm488, %v490, %v486
    %v492 = vmul.f32 1.0, %v491
    %v493 = vtanh.pop %v434
    %v494 = vmul.f32 %v477, %v137
    %v495 = vmul.f32 %v462, %v493
    %v496 = vadd.f32 %v494, %v495
    %v497 = vtanh.pop %v496
    %v498 = vmul.f32 %v492, %v497
    %499 = vst [vmem:[#allocation14] sm:$0x3] %v498
    %500 = vst [vmem:[#allocation16] sm:$0x3] %v496
    %s501 = scalar_lea.vmem [#allocation7], 2
    %v502 = vld [vmem:[%s501] sm:$0x3]
    %s503 = scalar_lea.vmem [#allocation9], 2
    %v504 = vld [vmem:[%s503] sm:$0x3]
    %s505 = scalar_lea.vmem [#allocation10], 1024
    %v506 = vld [vmem:[%s505] sm:$0xff]
    %v507 = vld [vmem:[%s505 + $0x8] sm:$0xff]
    %v508 = vld [vmem:[%s505 + $0x10] sm:$0xff]
    %v509 = vld [vmem:[%s505 + $0x18] sm:$0xff]
    %v510 = vld [vmem:[%s505 + $0x20] sm:$0xff]
    %v511 = vld [vmem:[%s505 + $0x28] sm:$0xff]
    %v512 = vld [vmem:[%s505 + $0x30] sm:$0xff]
    %v513 = vld [vmem:[%s505 + $0x38] sm:$0xff]
    %v514 = vld [vmem:[%s505 + $0x40] sm:$0xff]
    %v515 = vld [vmem:[%s505 + $0x48] sm:$0xff]
    %v516 = vld [vmem:[%s505 + $0x50] sm:$0xff]
    %v517 = vld [vmem:[%s505 + $0x58] sm:$0xff]
    %v518 = vld [vmem:[%s505 + $0x60] sm:$0xff]
    %v519 = vld [vmem:[%s505 + $0x68] sm:$0xff]
    %v520 = vld [vmem:[%s505 + $0x70] sm:$0xff]
    %v521 = vld [vmem:[%s505 + $0x78] sm:$0xff]
    %v522 = vld [vmem:[%s505 + $0x80] sm:$0xff]
    %v523 = vld [vmem:[%s505 + $0x88] sm:$0xff]
    %v524 = vld [vmem:[%s505 + $0x90] sm:$0xff]
    %v525 = vld [vmem:[%s505 + $0x98] sm:$0xff]
    %v526 = vld [vmem:[%s505 + $0xa0] sm:$0xff]
    %v527 = vld [vmem:[%s505 + $0xa8] sm:$0xff]
    %v528 = vld [vmem:[%s505 + $0xb0] sm:$0xff]
    %v529 = vld [vmem:[%s505 + $0xb8] sm:$0xff]
    %v530 = vld [vmem:[%s505 + $0xc0] sm:$0xff]
    %v531 = vld [vmem:[%s505 + $0xc8] sm:$0xff]
    %v532 = vld [vmem:[%s505 + $0xd0] sm:$0xff]
    %v533 = vld [vmem:[%s505 + $0xd8] sm:$0xff]
    %v534 = vld [vmem:[%s505 + $0xe0] sm:$0xff]
    %v535 = vld [vmem:[%s505 + $0xe8] sm:$0xff]
    %v536 = vld [vmem:[%s505 + $0xf0] sm:$0xff]
    %v537 = vld [vmem:[%s505 + $0xf8] sm:$0xff]
    %v538 = vld [vmem:[%s505 + $0x100] sm:$0xff]
    %v539 = vld [vmem:[%s505 + $0x108] sm:$0xff]
    %v540 = vld [vmem:[%s505 + $0x110] sm:$0xff]
    %v541 = vld [vmem:[%s505 + $0x118] sm:$0xff]
    %v542 = vld [vmem:[%s505 + $0x120] sm:$0xff]
    %v543 = vld [vmem:[%s505 + $0x128] sm:$0xff]
    %v544 = vld [vmem:[%s505 + $0x130] sm:$0xff]
    %v545 = vld [vmem:[%s505 + $0x138] sm:$0xff]
    %v546 = vld [vmem:[%s505 + $0x140] sm:$0xff]
    %v547 = vld [vmem:[%s505 + $0x148] sm:$0xff]
    %v548 = vld [vmem:[%s505 + $0x150] sm:$0xff]
    %v549 = vld [vmem:[%s505 + $0x158] sm:$0xff]
    %v550 = vld [vmem:[%s505 + $0x160] sm:$0xff]
    %v551 = vld [vmem:[%s505 + $0x168] sm:$0xff]
    %v552 = vld [vmem:[%s505 + $0x170] sm:$0xff]
    %v553 = vld [vmem:[%s505 + $0x178] sm:$0xff]
    %v554 = vld [vmem:[%s505 + $0x180] sm:$0xff]
    %v555 = vld [vmem:[%s505 + $0x188] sm:$0xff]
    %v556 = vld [vmem:[%s505 + $0x190] sm:$0xff]
    %v557 = vld [vmem:[%s505 + $0x198] sm:$0xff]
    %v558 = vld [vmem:[%s505 + $0x1a0] sm:$0xff]
    %v559 = vld [vmem:[%s505 + $0x1a8] sm:$0xff]
    %v560 = vld [vmem:[%s505 + $0x1b0] sm:$0xff]
    %v561 = vld [vmem:[%s505 + $0x1b8] sm:$0xff]
    %v562 = vld [vmem:[%s505 + $0x1c0] sm:$0xff]
    %v563 = vld [vmem:[%s505 + $0x1c8] sm:$0xff]
    %v564 = vld [vmem:[%s505 + $0x1d0] sm:$0xff]
    %v565 = vld [vmem:[%s505 + $0x1d8] sm:$0xff]
    %v566 = vld [vmem:[%s505 + $0x1e0] sm:$0xff]
    %v567 = vld [vmem:[%s505 + $0x1e8] sm:$0xff]
    %v568 = vld [vmem:[%s505 + $0x1f0] sm:$0xff]
    %v569 = vld [vmem:[%s505 + $0x1f8] sm:$0xff]
    %v570 = vld [vmem:[%s505 + $0x200] sm:$0xff]
    %v571 = vld [vmem:[%s505 + $0x208] sm:$0xff]
    %v572 = vld [vmem:[%s505 + $0x210] sm:$0xff]
    %v573 = vld [vmem:[%s505 + $0x218] sm:$0xff]
    %v574 = vld [vmem:[%s505 + $0x220] sm:$0xff]
    %v575 = vld [vmem:[%s505 + $0x228] sm:$0xff]
    %v576 = vld [vmem:[%s505 + $0x230] sm:$0xff]
    %v577 = vld [vmem:[%s505 + $0x238] sm:$0xff]
    %v578 = vld [vmem:[%s505 + $0x240] sm:$0xff]
    %v579 = vld [vmem:[%s505 + $0x248] sm:$0xff]
    %v580 = vld [vmem:[%s505 + $0x250] sm:$0xff]
    %v581 = vld [vmem:[%s505 + $0x258] sm:$0xff]
    %v582 = vld [vmem:[%s505 + $0x260] sm:$0xff]
    %v583 = vld [vmem:[%s505 + $0x268] sm:$0xff]
    %v584 = vld [vmem:[%s505 + $0x270] sm:$0xff]
    %v585 = vld [vmem:[%s505 + $0x278] sm:$0xff]
    %v586 = vld [vmem:[%s505 + $0x280] sm:$0xff]
    %v587 = vld [vmem:[%s505 + $0x288] sm:$0xff]
    %v588 = vld [vmem:[%s505 + $0x290] sm:$0xff]
    %v589 = vld [vmem:[%s505 + $0x298] sm:$0xff]
    %v590 = vld [vmem:[%s505 + $0x2a0] sm:$0xff]
    %v591 = vld [vmem:[%s505 + $0x2a8] sm:$0xff]
    %v592 = vld [vmem:[%s505 + $0x2b0] sm:$0xff]
    %v593 = vld [vmem:[%s505 + $0x2b8] sm:$0xff]
    %v594 = vld [vmem:[%s505 + $0x2c0] sm:$0xff]
    %v595 = vld [vmem:[%s505 + $0x2c8] sm:$0xff]
    %v596 = vld [vmem:[%s505 + $0x2d0] sm:$0xff]
    %v597 = vld [vmem:[%s505 + $0x2d8] sm:$0xff]
    %v598 = vld [vmem:[%s505 + $0x2e0] sm:$0xff]
    %v599 = vld [vmem:[%s505 + $0x2e8] sm:$0xff]
    %v600 = vld [vmem:[%s505 + $0x2f0] sm:$0xff]
    %v601 = vld [vmem:[%s505 + $0x2f8] sm:$0xff]
    %v602 = vld [vmem:[%s505 + $0x300] sm:$0xff]
    %v603 = vld [vmem:[%s505 + $0x308] sm:$0xff]
    %v604 = vld [vmem:[%s505 + $0x310] sm:$0xff]
    %v605 = vld [vmem:[%s505 + $0x318] sm:$0xff]
    %v606 = vld [vmem:[%s505 + $0x320] sm:$0xff]
    %v607 = vld [vmem:[%s505 + $0x328] sm:$0xff]
    %v608 = vld [vmem:[%s505 + $0x330] sm:$0xff]
    %v609 = vld [vmem:[%s505 + $0x338] sm:$0xff]
    %v610 = vld [vmem:[%s505 + $0x340] sm:$0xff]
    %v611 = vld [vmem:[%s505 + $0x348] sm:$0xff]
    %v612 = vld [vmem:[%s505 + $0x350] sm:$0xff]
    %v613 = vld [vmem:[%s505 + $0x358] sm:$0xff]
    %v614 = vld [vmem:[%s505 + $0x360] sm:$0xff]
    %v615 = vld [vmem:[%s505 + $0x368] sm:$0xff]
    %v616 = vld [vmem:[%s505 + $0x370] sm:$0xff]
    %v617 = vld [vmem:[%s505 + $0x378] sm:$0xff]
    %v618 = vld [vmem:[%s505 + $0x380] sm:$0xff]
    %v619 = vld [vmem:[%s505 + $0x388] sm:$0xff]
    %v620 = vld [vmem:[%s505 + $0x390] sm:$0xff]
    %v621 = vld [vmem:[%s505 + $0x398] sm:$0xff]
    %v622 = vld [vmem:[%s505 + $0x3a0] sm:$0xff]
    %v623 = vld [vmem:[%s505 + $0x3a8] sm:$0xff]
    %v624 = vld [vmem:[%s505 + $0x3b0] sm:$0xff]
    %v625 = vld [vmem:[%s505 + $0x3b8] sm:$0xff]
    %v626 = vld [vmem:[%s505 + $0x3c0] sm:$0xff]
    %v627 = vld [vmem:[%s505 + $0x3c8] sm:$0xff]
    %v628 = vld [vmem:[%s505 + $0x3d0] sm:$0xff]
    %v629 = vld [vmem:[%s505 + $0x3d8] sm:$0xff]
    %v630 = vld [vmem:[%s505 + $0x3e0] sm:$0xff]
    %v631 = vld [vmem:[%s505 + $0x3e8] sm:$0xff]
    %v632 = vld [vmem:[%s505 + $0x3f0] sm:$0xff]
    %v633 = vld [vmem:[%s505 + $0x3f8] sm:$0xff]
    %s634 = scalar_lea.vmem %s5, 4
    %v635 = vld [vmem:[%s634] sm:$0xf]
    %v637 = vperm.slane %v635, 0
    %v638 = vperm.slane %v635, 1
    %v639 = vperm.slane %v635, 2
    %v640 = vperm.slane %v635, 3
    %645 = vmatpush.msra.mxu0 %v566
    %646 = vmatpush.msra.mxu0 %v562
    %647 = vmatpush.msra.mxu0 %v558
    %648 = vmatpush.msra.mxu0 %v554
    %649 = vmatpush.msra.mxu0 %v550
    %650 = vmatpush.msra.mxu0 %v546
    %651 = vmatpush.msra.mxu0 %v542
    %652 = vmatpush.msra.mxu0 %v538
    %653 = vmatpush.msra.mxu0 %v534
    %654 = vmatpush.msra.mxu0 %v530
    %655 = vmatpush.msra.mxu0 %v526
    %656 = vmatpush.msra.mxu0 %v522
    %657 = vmatpush.msra.mxu0 %v518
    %658 = vmatpush.msra.mxu0 %v514
    %659 = vmatpush.msra.mxu0 %v510
    %660 = vmatpush.msra.mxu0 %v506
    %661 = vmatmul.f32.gmra.mxu0 %v498
    %v662 = vpop.f32.mrf.mxu0
    %v663 = vadd.f32 %v637, %v662
    %664 = vdwg.mxu0
    %665 = vmatpush.msra.mxu0 %v630
    %666 = vmatpush.msra.mxu0 %v626
    %667 = vmatpush.msra.mxu0 %v622
    %668 = vmatpush.msra.mxu0 %v618
    %669 = vmatpush.msra.mxu0 %v614
    %670 = vmatpush.msra.mxu0 %v610
    %671 = vmatpush.msra.mxu0 %v606
    %672 = vmatpush.msra.mxu0 %v602
    %673 = vmatpush.msra.mxu0 %v598
    %674 = vmatpush.msra.mxu0 %v594
    %675 = vmatpush.msra.mxu0 %v590
    %676 = vmatpush.msra.mxu0 %v586
    %677 = vmatpush.msra.mxu0 %v582
    %678 = vmatpush.msra.mxu0 %v578
    %679 = vmatpush.msra.mxu0 %v574
    %680 = vmatpush.msra.mxu0 %v570
    %681 = vmatmul.f32.gmra.mxu0 %v502
    %v682 = vpop.f32.mrf.mxu0
    %v683 = vadd.f32 %v663, %v682
    %684 = vdwg.mxu0
    %685 = vmatpush.msra.mxu0 %v567
    %686 = vmatpush.msra.mxu0 %v563
    %687 = vmatpush.msra.mxu0 %v559
    %688 = vmatpush.msra.mxu0 %v555
    %689 = vmatpush.msra.mxu0 %v551
    %690 = vmatpush.msra.mxu0 %v547
    %691 = vmatpush.msra.mxu0 %v543
    %692 = vmatpush.msra.mxu0 %v539
    %693 = vmatpush.msra.mxu0 %v535
    %694 = vmatpush.msra.mxu0 %v531
    %695 = vmatpush.msra.mxu0 %v527
    %696 = vmatpush.msra.mxu0 %v523
    %697 = vmatpush.msra.mxu0 %v519
    %698 = vmatpush.msra.mxu0 %v515
    %699 = vmatpush.msra.mxu0 %v511
    %700 = vmatpush.msra.mxu0 %v507
    %701 = vmatmul.f32.gmra.mxu0 %v498
    %v702 = vpop.f32.mrf.mxu0
    %v703 = vadd.f32 %v638, %v702
    %704 = vdwg.mxu0
    %705 = vmatpush.msra.mxu0 %v631
    %706 = vmatpush.msra.mxu0 %v627
    %707 = vmatpush.msra.mxu0 %v623
    %708 = vmatpush.msra.mxu0 %v619
    %709 = vmatpush.msra.mxu0 %v615
    %710 = vmatpush.msra.mxu0 %v611
    %711 = vmatpush.msra.mxu0 %v607
    %712 = vmatpush.msra.mxu0 %v603
    %713 = vmatpush.msra.mxu0 %v599
    %714 = vmatpush.msra.mxu0 %v595
    %715 = vmatpush.msra.mxu0 %v591
    %716 = vmatpush.msra.mxu0 %v587
    %717 = vmatpush.msra.mxu0 %v583
    %718 = vmatpush.msra.mxu0 %v579
    %719 = vmatpush.msra.mxu0 %v575
    %720 = vmatpush.msra.mxu0 %v571
    %721 = vmatmul.f32.gmra.mxu0 %v502
    %v722 = vpop.f32.mrf.mxu0
    %v723 = vadd.f32 %v703, %v722
    %724 = vdwg.mxu0
    %725 = vmatpush.msra.mxu0 %v568
    %726 = vmatpush.msra.mxu0 %v564
    %727 = vmatpush.msra.mxu0 %v560
    %728 = vmatpush.msra.mxu0 %v556
    %729 = vmatpush.msra.mxu0 %v552
    %730 = vmatpush.msra.mxu0 %v548
    %731 = vmatpush.msra.mxu0 %v544
    %732 = vmatpush.msra.mxu0 %v540
    %733 = vmatpush.msra.mxu0 %v536
    %734 = vmatpush.msra.mxu0 %v532
    %735 = vmatpush.msra.mxu0 %v528
    %736 = vmatpush.msra.mxu0 %v524
    %737 = vmatpush.msra.mxu0 %v520
    %738 = vmatpush.msra.mxu0 %v516
    %739 = vmatpush.msra.mxu0 %v512
    %740 = vmatpush.msra.mxu0 %v508
    %741 = vmatmul.f32.gmra.mxu0 %v498
    %v742 = vpop.f32.mrf.mxu0
    %v743 = vadd.f32 %v639, %v742
    %744 = vdwg.mxu0
    %745 = vmatpush.msra.mxu0 %v632
    %746 = vmatpush.msra.mxu0 %v628
    %747 = vmatpush.msra.mxu0 %v624
    %748 = vmatpush.msra.mxu0 %v620
    %749 = vmatpush.msra.mxu0 %v616
    %750 = vmatpush.msra.mxu0 %v612
    %751 = vmatpush.msra.mxu0 %v608
    %752 = vmatpush.msra.mxu0 %v604
    %753 = vmatpush.msra.mxu0 %v600
    %754 = vmatpush.msra.mxu0 %v596
    %755 = vmatpush.msra.mxu0 %v592
    %756 = vmatpush.msra.mxu0 %v588
    %757 = vmatpush.msra.mxu0 %v584
    %758 = vmatpush.msra.mxu0 %v580
    %759 = vmatpush.msra.mxu0 %v576
    %760 = vmatpush.msra.mxu0 %v572
    %761 = vmatmul.f32.gmra.mxu0 %v502
    %v762 = vpop.f32.mrf.mxu0
    %v763 = vadd.f32 %v743, %v762
    %764 = vdwg.mxu0
    %765 = vmatpush.msra.mxu0 %v569
    %766 = vmatpush.msra.mxu0 %v565
    %767 = vmatpush.msra.mxu0 %v561
    %768 = vmatpush.msra.mxu0 %v557
    %769 = vmatpush.msra.mxu0 %v553
    %770 = vmatpush.msra.mxu0 %v549
    %771 = vmatpush.msra.mxu0 %v545
    %772 = vmatpush.msra.mxu0 %v541
    %773 = vmatpush.msra.mxu0 %v537
    %774 = vmatpush.msra.mxu0 %v533
    %775 = vmatpush.msra.mxu0 %v529
    %776 = vmatpush.msra.mxu0 %v525
    %777 = vmatpush.msra.mxu0 %v521
    %778 = vmatpush.msra.mxu0 %v517
    %779 = vmatpush.msra.mxu0 %v513
    %780 = vmatpush.msra.mxu0 %v509
    %781 = vmatmul.f32.gmra.mxu0 %v498
    %v782 = vpop.f32.mrf.mxu0
    %v783 = vadd.f32 %v640, %v782
    %784 = vdwg.mxu0
    %785 = vmatpush.msra.mxu0 %v633
    %786 = vmatpush.msra.mxu0 %v629
    %787 = vmatpush.msra.mxu0 %v625
    %788 = vmatpush.msra.mxu0 %v621
    %789 = vmatpush.msra.mxu0 %v617
    %790 = vmatpush.msra.mxu0 %v613
    %791 = vmatpush.msra.mxu0 %v609
    %792 = vmatpush.msra.mxu0 %v605
    %793 = vmatpush.msra.mxu0 %v601
    %794 = vmatpush.msra.mxu0 %v597
    %795 = vmatpush.msra.mxu0 %v593
    %796 = vmatpush.msra.mxu0 %v589
    %797 = vmatpush.msra.mxu0 %v585
    %798 = vmatpush.msra.mxu0 %v581
    %799 = vmatpush.msra.mxu0 %v577
    %800 = vmatpush.msra.mxu0 %v573
    %801 = vmatmul.f32.gmra.mxu0 %v502
    %v802 = vpop.f32.mrf.mxu0
    %v803 = vadd.f32 %v783, %v802
    %804 = vdwg.mxu0
    %v805 = vxor.u32 %v683, 2147483648
    %v806 = vxor.u32 %v723, 2147483648
    %v807 = vxor.u32 %v763, 2147483648
    %v808 = vmul.f32 %v805, 1.442695
    %v809 = vpow.pop %v808
    %v810 = vmul.f32 %v806, 1.442695
    %v811 = vpow.pop %v810
    %v812 = vmul.f32 %v807, 1.442695
    %v813 = vpow.pop %v812
    %v814 = vadd.f32 %v809, 1.0
    %v815 = vadd.f32 %v811, 1.0
    %v816 = vadd.f32 %v813, 1.0
    %v817 = vrcp.pop %v814
    %v818 = vmul.f32 %v814, %v817
    %v819 = vsub.f32 1.0, %v818
    %v820 = vmul.f32 %v817, %v819
    %v821 = vadd.f32 %v817, %v820
    %vm822 = vweird.f32 %v814
    %vm823 = vweird.f32 %v817
    %vm824 = vmor %vm822, %vm823
    %v825 = vsel %vm824, %v817, %v821
    %v826 = vand.u32 2147483647, %v814
    %vm827 = vcmp.eq.f32.partialorder %v826, 8.507059e+37
    %v828 = vand.u32 %v814, 2147483648
    %v829 = vor.u32 1.1754944e-38, %v828
    %v830 = vsel %vm827, %v829, %v825
    %v831 = vmul.f32 1.0, %v830
    %v832 = vrcp.pop %v815
    %v833 = vmul.f32 %v815, %v832
    %v834 = vsub.f32 1.0, %v833
    %v835 = vmul.f32 %v832, %v834
    %v836 = vadd.f32 %v832, %v835
    %vm837 = vweird.f32 %v815
    %vm838 = vweird.f32 %v832
    %vm839 = vmor %vm837, %vm838
    %v840 = vsel %vm839, %v832, %v836
    %v841 = vand.u32 2147483647, %v815
    %vm842 = vcmp.eq.f32.partialorder %v841, 8.507059e+37
    %v843 = vand.u32 %v815, 2147483648
    %v844 = vor.u32 1.1754944e-38, %v843
    %v845 = vsel %vm842, %v844, %v840
    %v846 = vmul.f32 1.0, %v845
    %v847 = vrcp.pop %v816
    %v848 = vmul.f32 %v816, %v847
    %v849 = vsub.f32 1.0, %v848
    %v850 = vmul.f32 %v847, %v849
    %v851 = vadd.f32 %v847, %v850
    %vm852 = vweird.f32 %v816
    %vm853 = vweird.f32 %v847
    %vm854 = vmor %vm852, %vm853
    %v855 = vsel %vm854, %v847, %v851
    %v856 = vand.u32 2147483647, %v816
    %vm857 = vcmp.eq.f32.partialorder %v856, 8.507059e+37
    %v858 = vand.u32 %v816, 2147483648
    %v859 = vor.u32 1.1754944e-38, %v858
    %v860 = vsel %vm857, %v859, %v855
    %v861 = vmul.f32 1.0, %v860
    %v862 = vtanh.pop %v803
    %v863 = vmul.f32 %v846, %v504
    %v864 = vmul.f32 %v831, %v862
    %v865 = vadd.f32 %v863, %v864
    %v866 = vtanh.pop %v865
    %v867 = vmul.f32 %v861, %v866
    %s868 = scalar_lea.vmem [#allocation14], 2
    %869 = vst [vmem:[%s868] sm:$0x3] %v867
    %s870 = scalar_lea.vmem [#allocation16], 2
    %871 = vst [vmem:[%s870] sm:$0x3] %v865
    %v872 = vld [vmem:[#allocation12] sm:$0xff]
    %v873 = vld [vmem:[#allocation12 + $0x8] sm:$0xff]
    %v874 = vld [vmem:[#allocation12 + $0x10] sm:$0xff]
    %v875 = vld [vmem:[#allocation12 + $0x18] sm:$0xff]
    %v876 = vld [vmem:[#allocation12 + $0x20] sm:$0xff]
    %v877 = vld [vmem:[#allocation12 + $0x28] sm:$0xff]
    %v878 = vld [vmem:[#allocation12 + $0x30] sm:$0xff]
    %v879 = vld [vmem:[#allocation12 + $0x38] sm:$0xff]
    %v880 = vld [vmem:[#allocation12 + $0x40] sm:$0xff]
    %v881 = vld [vmem:[#allocation12 + $0x48] sm:$0xff]
    %v882 = vld [vmem:[#allocation12 + $0x50] sm:$0xff]
    %v883 = vld [vmem:[#allocation12 + $0x58] sm:$0xff]
    %v884 = vld [vmem:[#allocation12 + $0x60] sm:$0xff]
    %v885 = vld [vmem:[#allocation12 + $0x68] sm:$0xff]
    %v886 = vld [vmem:[#allocation12 + $0x70] sm:$0xff]
    %v887 = vld [vmem:[#allocation12 + $0x78] sm:$0xff]
    %v888 = vld [vmem:[%s7] sm:$0x1]
    %v890 = vperm.slane %v888, 0
    %892 = vmatpush.msra.mxu0 %v887
    %893 = vmatpush.msra.mxu0 %v886
    %894 = vmatpush.msra.mxu0 %v885
    %895 = vmatpush.msra.mxu0 %v884
    %896 = vmatpush.msra.mxu0 %v883
    %897 = vmatpush.msra.mxu0 %v882
    %898 = vmatpush.msra.mxu0 %v881
    %899 = vmatpush.msra.mxu0 %v880
    %900 = vmatpush.msra.mxu0 %v879
    %901 = vmatpush.msra.mxu0 %v878
    %902 = vmatpush.msra.mxu0 %v877
    %903 = vmatpush.msra.mxu0 %v876
    %904 = vmatpush.msra.mxu0 %v875
    %905 = vmatpush.msra.mxu0 %v874
    %906 = vmatpush.msra.mxu0 %v873
    %907 = vmatpush.msra.mxu0 %v872
    %908 = vmatmul.f32.gmra.mxu0 %v867
    %v909 = vpop.f32.mrf.mxu0
    %v910 = vadd.f32 %v890, %v909
    %911 = vdwg.mxu0
    %912 = vst [vmem:[#allocation13] sm:$0x3] %v910
    // Predicated region
    $region58: #{tpu_custom_call.1} parent=1 // pred_check
      _
    $region59: #{tpu_custom_call.1} parent=1 // pred_check_branch
      %914 = sbr.rel (0) target = $region61
    $region60: #{tpu_custom_call.1} parent=1 // pred_region
      %916 = vsyncadd [#allocation4], 0
      %s918 = sshll.u32 [#allocation13], 4
      %s919 = int_to_ptr.vmem [resolvable:$true] %s918
      %s920 = sshll.u32 %s8, 4
      %s921 = int_to_ptr.hbm [resolvable:$true] %s920
      %923 = dma.vmem_to_hbm [thread:$0]  %s919, 32, %s921, [#allocation4]
    $region61: #{tpu_custom_call.1} parent=1 // pred_fallthru
      _
    // Predicated region
    $region62: #{tpu_custom_call.1} parent=1 // pred_check
      _
    $region63: #{tpu_custom_call.1} parent=1 // pred_check_branch
      %925 = sbr.rel (0) target = $region65
    $region64: #{tpu_custom_call.1} parent=1 // pred_region
      %927 = vsyncadd [#allocation15], 0
      %s928 = sshll.u32 [#allocation14], 4
      %s929 = int_to_ptr.vmem [resolvable:$true] %s928
      %s930 = sshll.u32 %s9, 4
      %s931 = int_to_ptr.hbm [resolvable:$true] %s930
      %936 = dma.vmem_to_hbm [thread:$0]  %s929, 64, %s931, [#allocation15], 32, 32, 2
    $region65: #{tpu_custom_call.1} parent=1 // pred_fallthru
      _
    // Predicated region
    $region66: #{tpu_custom_call.1} parent=1 // pred_check
      _
    $region67: #{tpu_custom_call.1} parent=1 // pred_check_branch
      %938 = sbr.rel (0) target = $region69
    $region68: #{tpu_custom_call.1} parent=1 // pred_region
      %940 = vsyncadd [#allocation15], 0
      %s941 = sshll.u32 [#allocation16], 4
      %s942 = int_to_ptr.vmem [resolvable:$true] %s941
      %s943 = sshll.u32 %s10, 4
      %s944 = int_to_ptr.hbm [resolvable:$true] %s943
      %949 = dma.vmem_to_hbm [thread:$0]  %s942, 64, %s944, [#allocation15], 32, 32, 2
    $region69: #{tpu_custom_call.1} parent=1 // pred_fallthru
      _
    // Predicated region
    $region70: #{tpu_custom_call.1} parent=1 // pred_check
      _
    $region71: #{tpu_custom_call.1} parent=1 // pred_check_branch
      %951 = sbr.rel (0) target = $region73
    $region72: #{tpu_custom_call.1} parent=1 // pred_region
      %953 = dma.done [#allocation4], 32
    $region73: #{tpu_custom_call.1} parent=1 // pred_fallthru
      _
    // Predicated region
    $region74: #{tpu_custom_call.1} parent=1 // pred_check
      _
    $region75: #{tpu_custom_call.1} parent=1 // pred_check_branch
      %955 = sbr.rel (0) target = $region77
    $region76: #{tpu_custom_call.1} parent=1 // pred_region
      %957 = dma.done [#allocation15], 64
    $region77: #{tpu_custom_call.1} parent=1 // pred_fallthru
      _
    // Predicated region
    $region78: #{tpu_custom_call.1} parent=1 // pred_check
      _
    $region79: #{tpu_custom_call.1} parent=1 // pred_check_branch
      %959 = sbr.rel (0) target = $region81
    $region80: #{tpu_custom_call.1} parent=1 // pred_region
      %961 = dma.done [#allocation15], 64
    $region81: #{tpu_custom_call.1} parent=1 // pred_fallthru
      _
    %962 = vsyncpa [#allocation3], 1
    %963 = vsyncpa [#allocation8], 1
    %964 = vsyncpa [#allocation11], 1
    %965 = vsyncpa [#allocation4], 1
    %966 = vsyncpa [#allocation15], 1
    %967 = vsyncpa [#allocation5], 1

</llo_original>
